<compile_context>
chip_gen: v7x
topology: tpu7x:2x2x1
jax: 0.10.0
libtpu: 0.0.40
codegen_flags: <defaults>
</compile_context>

<pallas_src>
import jax
import jax.numpy as jnp
from jax.experimental import pallas as pl
from jax.experimental.pallas import tpu as pltpu


def mlp_kernel(x_ref, w1_ref, b1_ref, w2_ref, b2_ref, o_ref):
    # Fused MLP in natural (batch, feature) layout: two MXU matmuls + bias + ReLU.
    x = x_ref[...]                                                   # (bt, in_dim)
    h = jnp.dot(x, w1_ref[...],
                preferred_element_type=jnp.float32) + b1_ref[...]    # (bt, hid), f32 acc
    h = jnp.maximum(h, 0.0)
    # NOTE: for bf16 params the f32 intermediate is cast back to bf16 before the second
    # matmul (bf16-native MXU path); this deviates slightly from a strict f32 reference
    # and is covered by the looser bf16 tolerance below.
    y = jnp.dot(h.astype(w2_ref.dtype), w2_ref[...],
                preferred_element_type=jnp.float32) + b2_ref[...]    # (bt, emb), f32 acc
    o_ref[...] = jnp.maximum(y, 0.0).astype(o_ref.dtype)


def _round_up(n, m):
    return ((n + m - 1) // m) * m


def _batch_semantics(num_tiles):
    # Only core_parallel changes codegen; use it on v7x (2 TCs) when there are >= 2
    # batch tiles to shard.  Single-TC chips (v5e/v6e) keep a plain axis.
    if num_tiles >= 2:
        try:
            kind = jax.devices()[0].device_kind.lower()
        except Exception:
            kind = ""
        if "v7" in kind:
            return (pltpu.CORE_PARALLEL,)
        return ("parallel",)
    return ("arbitrary",)


def context_encoder(x, w1, b1, w2, b2, *, batch_tile=None):
    """x: (B, in_dim); w1: (in_dim, hid); b1: (hid,)/(1,hid); w2: (hid, emb); b2: (emb,)/(1,emb)."""
    B, in_dim = x.shape
    hid = w1.shape[1]
    emb = w2.shape[1]

    # Tile selection: HBM/overhead-bound op -> take the biggest tile that comfortably
    # fits scoped VMEM on every generation.  At these caps the double-buffered x/out
    # tiles + the (bt, hid) f32 intermediate total ~<12 MiB, well under the 32 MiB
    # scoped default (v5e/v6e/v7x) and v7x's 64 MiB physical VMEM.
    cap = 32768 if x.dtype == jnp.bfloat16 else 16384
    if batch_tile is None:
        batch_tile = B if B <= cap else cap
    else:
        batch_tile = min(batch_tile, B)
    if batch_tile != B:
        # second-to-last block dim must be a multiple of 8 unless it spans the full array
        batch_tile = max(8, _round_up(batch_tile, 8))
        batch_tile = min(batch_tile, cap)

    num_tiles = pl.cdiv(B, batch_tile)   # ragged last tile handled by Pallas masking

    # Biases as row vectors: bias add broadcasts along sublanes, no lane broadcast.
    b1r = jnp.reshape(b1, (1, hid)).astype(w1.dtype)
    b2r = jnp.reshape(b2, (1, emb)).astype(w2.dtype)

    return pl.pallas_call(
        mlp_kernel,
        out_shape=jax.ShapeDtypeStruct((B, emb), x.dtype),
        grid_spec=pl.GridSpec(
            grid=(num_tiles,),
            in_specs=[
                pl.BlockSpec((batch_tile, in_dim), lambda i: (i, 0)),  # x tile (contiguous DMA)
                pl.BlockSpec((in_dim, hid), lambda i: (0, 0)),         # W1 (VMEM-resident)
                pl.BlockSpec((1, hid), lambda i: (0, 0)),              # b1
                pl.BlockSpec((hid, emb), lambda i: (0, 0)),            # W2 (VMEM-resident)
                pl.BlockSpec((1, emb), lambda i: (0, 0)),              # b2
            ],
            out_specs=pl.BlockSpec((batch_tile, emb), lambda i: (i, 0)),
        ),
        compiler_params=pltpu.CompilerParams(
            dimension_semantics=_batch_semantics(num_tiles),
            vmem_limit_bytes=32 * 1024 * 1024,
        ),
    )(x, w1, b1r, w2, b2r)


def init_params(key, input_dim=6, emb_dim=32, hidden=64, dtype=jnp.float32):
    # Deterministic synthetic init (PyTorch-style uniform bounds), stored as (in, out).
    k1, k2, k3, k4 = jax.random.split(key, 4)
    bound1 = 1.0 / (input_dim ** 0.5)
    bound2 = 1.0 / (hidden ** 0.5)
    w1 = jax.random.uniform(k1, (input_dim, hidden), dtype, -bound1, bound1)
    b1 = jax.random.uniform(k2, (1, hidden), dtype, -bound1, bound1)
    w2 = jax.random.uniform(k3, (hidden, emb_dim), dtype, -bound2, bound2)
    b2 = jax.random.uniform(k4, (1, emb_dim), dtype, -bound2, bound2)
    return w1, b1, w2, b2


if __name__ == "__main__":
    key = jax.random.PRNGKey(0)
    kx, kp = jax.random.split(key)

    B, input_dim, emb_dim = 256, 6, 32
    x = jax.random.normal(kx, (B, input_dim), jnp.float32)
    w1, b1, w2, b2 = init_params(kp, input_dim=input_dim, emb_dim=emb_dim)

    ref = jnp.maximum(jnp.maximum(x @ w1 + b1, 0.0) @ w2 + b2, 0.0)

    # f32, default single-tile path (grid=(1,)): no wrapper relayouts, one fused kernel.
    out = context_encoder(x, w1, b1, w2, b2)
    jax.block_until_ready(out)
    assert out.shape == (B, emb_dim)
    assert jnp.allclose(out, ref, atol=1e-5, rtol=1e-5)

    # f32, forced multi-tile path (exercises the grid loop + VMEM-resident weights).
    out_tiled = context_encoder(x, w1, b1, w2, b2, batch_tile=128)
    jax.block_until_ready(out_tiled)
    assert jnp.allclose(out_tiled, ref, atol=1e-5, rtol=1e-5)

    # bf16 I/O path (preferred when the caller tolerates it: halves HBM bytes).
    xb = x.astype(jnp.bfloat16)
    w1b, b1b, w2b, b2b = (p.astype(jnp.bfloat16) for p in (w1, b1, w2, b2))
    out_bf16 = context_encoder(xb, w1b, b1b, w2b, b2b)
    jax.block_until_ready(out_bf16)
    assert out_bf16.shape == (B, emb_dim)
    assert jnp.allclose(out_bf16.astype(jnp.float32), ref, atol=1e-1, rtol=1e-1)

    print("KERNEL_OK")
</pallas_src>

<mosaic_0001>
module attributes {stable_mosaic.version = 11 : i64} {
  func.func @mlp_kernel(%arg0: i32, %arg1: memref<256x6xf32, #tpu.memory_space<vmem>>, %arg2: memref<6x64xf32, #tpu.memory_space<vmem>>, %arg3: memref<1x64xf32, #tpu.memory_space<vmem>>, %arg4: memref<64x32xf32, #tpu.memory_space<vmem>>, %arg5: memref<1x32xf32, #tpu.memory_space<vmem>>, %arg6: memref<256x32xf32, #tpu.memory_space<vmem>>) attributes {dimension_semantics = [#tpu.dimension_semantics<arbitrary>], iteration_bounds = array<i64: 1>, scalar_prefetch = 0 : i64, scratch_operands = 0 : i64, tpu.core_type = #tpu.core_type<tc>, window_params = [{transform_indices = @transform_0, window_bounds = array<i64: 256, 6>}, {pipeline_mode = #tpu.pipeline_mode<synchronous>, transform_indices = @transform_1, window_bounds = array<i64: 6, 64>}, {pipeline_mode = #tpu.pipeline_mode<synchronous>, transform_indices = @transform_2, window_bounds = array<i64: 1, 64>}, {pipeline_mode = #tpu.pipeline_mode<synchronous>, transform_indices = @transform_3, window_bounds = array<i64: 64, 32>}, {pipeline_mode = #tpu.pipeline_mode<synchronous>, transform_indices = @transform_4, window_bounds = array<i64: 1, 32>}, {transform_indices = @transform_5, window_bounds = array<i64: 256, 32>}]} {
    %c0 = arith.constant 0 : index
    %c0_0 = arith.constant 0 : index
    %0 = vector.load %arg1[%c0, %c0_0] : memref<256x6xf32, #tpu.memory_space<vmem>>, vector<256x6xf32>
    %c0_1 = arith.constant 0 : index
    %c0_2 = arith.constant 0 : index
    %1 = vector.load %arg2[%c0_1, %c0_2] : memref<6x64xf32, #tpu.memory_space<vmem>>, vector<6x64xf32>
    %cst = arith.constant dense<0.000000e+00> : vector<256x64xf32>
    %2 = tpu.matmul %0, %1, %cst {dimension_numbers = #tpu.dot_dimension_numbers<[1], [0], [0], [1], [0, 0, 1, 1], [], []>} : vector<256x6xf32>, vector<6x64xf32>, vector<256x64xf32> -> vector<256x64xf32>
    %c0_3 = arith.constant 0 : index
    %c0_4 = arith.constant 0 : index
    %3 = vector.load %arg3[%c0_3, %c0_4] : memref<1x64xf32, #tpu.memory_space<vmem>>, vector<1x64xf32>
    %4 = vector.broadcast %3 : vector<1x64xf32> to vector<256x64xf32>
    %5 = arith.addf %2, %4 : vector<256x64xf32>
    %cst_5 = arith.constant 0.000000e+00 : f32
    %6 = vector.broadcast %cst_5 : f32 to vector<256x64xf32>
    %7 = arith.maximumf %5, %6 : vector<256x64xf32>
    %c0_6 = arith.constant 0 : index
    %c0_7 = arith.constant 0 : index
    %8 = vector.load %arg4[%c0_6, %c0_7] : memref<64x32xf32, #tpu.memory_space<vmem>>, vector<64x32xf32>
    %cst_8 = arith.constant dense<0.000000e+00> : vector<256x32xf32>
    %9 = tpu.matmul %7, %8, %cst_8 {dimension_numbers = #tpu.dot_dimension_numbers<[1], [0], [0], [1], [0, 0, 1, 1], [], []>} : vector<256x64xf32>, vector<64x32xf32>, vector<256x32xf32> -> vector<256x32xf32>
    %c0_9 = arith.constant 0 : index
    %c0_10 = arith.constant 0 : index
    %10 = vector.load %arg5[%c0_9, %c0_10] : memref<1x32xf32, #tpu.memory_space<vmem>>, vector<1x32xf32>
    %11 = vector.broadcast %10 : vector<1x32xf32> to vector<256x32xf32>
    %12 = arith.addf %9, %11 : vector<256x32xf32>
    %cst_11 = arith.constant 0.000000e+00 : f32
    %13 = vector.broadcast %cst_11 : f32 to vector<256x32xf32>
    %14 = arith.maximumf %12, %13 : vector<256x32xf32>
    %c0_12 = arith.constant 0 : index
    %c0_13 = arith.constant 0 : index
    %15 = vector.load %arg6[%c0_12, %c0_13] : memref<256x32xf32, #tpu.memory_space<vmem>>, vector<256x32xf32>
    tpu.vector_store %arg6[%c0_12, %c0_13], %14 {strides = array<i32>} : memref<256x32xf32, #tpu.memory_space<vmem>>, vector<256x32xf32>,
    return
  }
  func.func @transform_0(%arg0: i32) -> (i32, i32) {
    %c0_i32 = arith.constant 0 : i32
    %c0_i32_0 = arith.constant 0 : i32
    return %arg0, %c0_i32 : i32, i32
  }
  func.func @transform_1(%arg0: i32) -> (i32, i32) {
    %c0_i32 = arith.constant 0 : i32
    %c0_i32_0 = arith.constant 0 : i32
    %c0_i32_1 = arith.constant 0 : i32
    return %c0_i32, %c0_i32_0 : i32, i32
  }
  func.func @transform_2(%arg0: i32) -> (i32, i32) {
    %c0_i32 = arith.constant 0 : i32
    %c0_i32_0 = arith.constant 0 : i32
    %c0_i32_1 = arith.constant 0 : i32
    return %c0_i32, %c0_i32_0 : i32, i32
  }
  func.func @transform_3(%arg0: i32) -> (i32, i32) {
    %c0_i32 = arith.constant 0 : i32
    %c0_i32_0 = arith.constant 0 : i32
    %c0_i32_1 = arith.constant 0 : i32
    return %c0_i32, %c0_i32_0 : i32, i32
  }
  func.func @transform_4(%arg0: i32) -> (i32, i32) {
    %c0_i32 = arith.constant 0 : i32
    %c0_i32_0 = arith.constant 0 : i32
    %c0_i32_1 = arith.constant 0 : i32
    return %c0_i32, %c0_i32_0 : i32, i32
  }
  func.func @transform_5(%arg0: i32) -> (i32, i32) {
    %c0_i32 = arith.constant 0 : i32
    %c0_i32_0 = arith.constant 0 : i32
    return %arg0, %c0_i32 : i32, i32
  }
}

</mosaic_0001>

<llo_original>
// kernel: tpu_custom_call.1
$region0: #{tpu_custom_call.1}
  #allocation0 [shape = 'u32[]', space=smem, size = 0x4, offset = 0x4, fixed_abs, tag = 'smem constant byte address 0x4 - core index']
  #allocation1 [shape = 'u32[144,128]{1,0:T(1,128)}', space=vmem, size = 0x12000, scoped, tag = 'internal scratch']
  %s0 = inlined_call_operand.vmem [shape: f32[256,6], index: 0, kind: input, shape index: {}]
  %s1 = inlined_call_operand.vmem [shape: f32[6,64], index: 1, kind: input, shape index: {}]
  %s2 = inlined_call_operand.vmem [shape: f32[1,64], index: 2, kind: input, shape index: {}]
  %s3 = inlined_call_operand.vmem [shape: f32[64,32], index: 3, kind: input, shape index: {}]
  %s4 = inlined_call_operand.vmem [shape: f32[1,32], index: 4, kind: input, shape index: {}]
  %s5 = inlined_call_operand.vmem [shape: f32[256,32], index: 5, kind: output, shape index: {}]
  %s6 = sld [smem:[#allocation0]]
  $region30: #{tpu_custom_call.1} parent=0
    _
  %s8 = ssub.s32 1, %s6
  %s9 = scalar_select 0, %s8, %s6
  // Predicated region
  $region2: #{tpu_custom_call.1} parent=0 // pred_check
    _
  $region3: #{tpu_custom_call.1} parent=0 // pred_check_branch
    %11 = sbr.rel (0) target = $region5
  $region4: #{tpu_custom_call.1} parent=0 // pred_region
    _
  $region5: #{tpu_custom_call.1} parent=0 // pred_fallthru
    _
  // Predicated region
  $region6: #{tpu_custom_call.1} parent=0 // pred_check
    _
  $region7: #{tpu_custom_call.1} parent=0 // pred_check_branch
    %13 = sbr.rel (0) target = $region9
  $region8: #{tpu_custom_call.1} parent=0 // pred_region
    _
  $region9: #{tpu_custom_call.1} parent=0 // pred_fallthru
    _
  // Predicated region
  $region10: #{tpu_custom_call.1} parent=0 // pred_check
    _
  $region11: #{tpu_custom_call.1} parent=0 // pred_check_branch
    %15 = sbr.rel (0) target = $region13
  $region12: #{tpu_custom_call.1} parent=0 // pred_region
    _
  $region13: #{tpu_custom_call.1} parent=0 // pred_fallthru
    _
  // Predicated region
  $region14: #{tpu_custom_call.1} parent=0 // pred_check
    _
  $region15: #{tpu_custom_call.1} parent=0 // pred_check_branch
    %17 = sbr.rel (0) target = $region17
  $region16: #{tpu_custom_call.1} parent=0 // pred_region
    _
  $region17: #{tpu_custom_call.1} parent=0 // pred_fallthru
    _
  // Predicated region
  $region18: #{tpu_custom_call.1} parent=0 // pred_check
    _
  $region19: #{tpu_custom_call.1} parent=0 // pred_check_branch
    %19 = sbr.rel (0) target = $region21
  $region20: #{tpu_custom_call.1} parent=0 // pred_region
    _
  $region21: #{tpu_custom_call.1} parent=0 // pred_fallthru
    _
  %v20 = vld [vmem:[%s0] sm:$0xff]
  %v21 = vld [vmem:[%s0 + $0x8] sm:$0xff]
  %v22 = vld [vmem:[%s0 + $0x10] sm:$0xff]
  %v23 = vld [vmem:[%s0 + $0x18] sm:$0xff]
  %v24 = vld [vmem:[%s0 + $0x20] sm:$0xff]
  %v25 = vld [vmem:[%s0 + $0x28] sm:$0xff]
  %v26 = vld [vmem:[%s0 + $0x30] sm:$0xff]
  %v27 = vld [vmem:[%s0 + $0x38] sm:$0xff]
  %v28 = vld [vmem:[%s0 + $0x40] sm:$0xff]
  %v29 = vld [vmem:[%s0 + $0x48] sm:$0xff]
  %v30 = vld [vmem:[%s0 + $0x50] sm:$0xff]
  %v31 = vld [vmem:[%s0 + $0x58] sm:$0xff]
  %v32 = vld [vmem:[%s0 + $0x60] sm:$0xff]
  %v33 = vld [vmem:[%s0 + $0x68] sm:$0xff]
  %v34 = vld [vmem:[%s0 + $0x70] sm:$0xff]
  %v35 = vld [vmem:[%s0 + $0x78] sm:$0xff]
  %v36 = vld [vmem:[%s0 + $0x80] sm:$0xff]
  %v37 = vld [vmem:[%s0 + $0x88] sm:$0xff]
  %v38 = vld [vmem:[%s0 + $0x90] sm:$0xff]
  %v39 = vld [vmem:[%s0 + $0x98] sm:$0xff]
  %v40 = vld [vmem:[%s0 + $0xa0] sm:$0xff]
  %v41 = vld [vmem:[%s0 + $0xa8] sm:$0xff]
  %v42 = vld [vmem:[%s0 + $0xb0] sm:$0xff]
  %v43 = vld [vmem:[%s0 + $0xb8] sm:$0xff]
  %v44 = vld [vmem:[%s0 + $0xc0] sm:$0xff]
  %v45 = vld [vmem:[%s0 + $0xc8] sm:$0xff]
  %v46 = vld [vmem:[%s0 + $0xd0] sm:$0xff]
  %v47 = vld [vmem:[%s0 + $0xd8] sm:$0xff]
  %v48 = vld [vmem:[%s0 + $0xe0] sm:$0xff]
  %v49 = vld [vmem:[%s0 + $0xe8] sm:$0xff]
  %v50 = vld [vmem:[%s0 + $0xf0] sm:$0xff]
  %v51 = vld [vmem:[%s0 + $0xf8] sm:$0xff]
  %v52 = vld [vmem:[%s1] sm:$0x3f]
  %v53 = vld [vmem:[%s2] sm:$0x1]
  %v55 = vlaneseq
  %v56 = vshrl.u32 %v55, 7
  %v57 = vsub.s32 0, %v56
  %v58 = vrot.slane %v53, %v57
  %vm60 = vcmask 48128
  %v62 = vsel %vm60, %v20, 0
  %v65 = vsel %vm60, %v21, 0
  %v68 = vsel %vm60, %v22, 0
  %v71 = vsel %vm60, %v23, 0
  %v74 = vsel %vm60, %v24, 0
  %v77 = vsel %vm60, %v25, 0
  %v80 = vsel %vm60, %v26, 0
  %v83 = vsel %vm60, %v27, 0
  %v86 = vsel %vm60, %v28, 0
  %v89 = vsel %vm60, %v29, 0
  %v92 = vsel %vm60, %v30, 0
  %v95 = vsel %vm60, %v31, 0
  %v98 = vsel %vm60, %v32, 0
  %v101 = vsel %vm60, %v33, 0
  %v104 = vsel %vm60, %v34, 0
  %v107 = vsel %vm60, %v35, 0
  %v110 = vsel %vm60, %v36, 0
  %v113 = vsel %vm60, %v37, 0
  %v116 = vsel %vm60, %v38, 0
  %v119 = vsel %vm60, %v39, 0
  %v122 = vsel %vm60, %v40, 0
  %v125 = vsel %vm60, %v41, 0
  %v128 = vsel %vm60, %v42, 0
  %v131 = vsel %vm60, %v43, 0
  %v134 = vsel %vm60, %v44, 0
  %v137 = vsel %vm60, %v45, 0
  %v140 = vsel %vm60, %v46, 0
  %v143 = vsel %vm60, %v47, 0
  %v146 = vsel %vm60, %v48, 0
  %v149 = vsel %vm60, %v49, 0
  %v152 = vsel %vm60, %v50, 0
  %v155 = vsel %vm60, %v51, 0
  %vm157 = vcmask 1045504
  %v159 = vsel %vm157, %v52, 0
  %161 = vmatprep.subr.mxu0 0.0
  %162 = vmatpush1.msra.mxu0 %v159
  %163 = vmatprep.subr.mxu0 0.0
  %164 = vmatpush1.msra.mxu0 0.0
  %165 = vmatprep.subr.mxu0 0.0
  %166 = vmatpush1.msra.mxu0 0.0
  %167 = vmatprep.subr.mxu0 0.0
  %168 = vmatpush1.msra.mxu0 0.0
  %169 = vmatprep.subr.mxu0 0.0
  %170 = vmatpush1.msra.mxu0 0.0
  %171 = vmatprep.subr.mxu0 0.0
  %172 = vmatpush1.msra.mxu0 0.0
  %173 = vmatprep.subr.mxu0 0.0
  %174 = vmatpush1.msra.mxu0 0.0
  %175 = vmatprep.subr.mxu0 0.0
  %176 = vmatpush1.msra.mxu0 0.0
  %177 = vmatprep.subr.mxu0 0.0
  %178 = vmatpush1.msra.mxu0 0.0
  %179 = vmatprep.subr.mxu0 0.0
  %180 = vmatpush1.msra.mxu0 0.0
  %181 = vmatprep.subr.mxu0 0.0
  %182 = vmatpush1.msra.mxu0 0.0
  %183 = vmatprep.subr.mxu0 0.0
  %184 = vmatpush1.msra.mxu0 0.0
  %185 = vmatprep.subr.mxu0 0.0
  %186 = vmatpush1.msra.mxu0 0.0
  %187 = vmatprep.subr.mxu0 0.0
  %188 = vmatpush1.msra.mxu0 0.0
  %189 = vmatprep.subr.mxu0 0.0
  %190 = vmatpush1.msra.mxu0 0.0
  %191 = vmatprep.subr.mxu0 0.0
  %192 = vmatpush1.msra.mxu0 0.0
  %193 = vmatprep.subr.mxu0 0.0
  %194 = vmatpush1.msra.mxu0 0.0
  %195 = vmatprep.subr.mxu0 0.0
  %196 = vmatpush1.msra.mxu0 0.0
  %197 = vmatprep.subr.mxu0 0.0
  %198 = vmatpush1.msra.mxu0 0.0
  %199 = vmatprep.subr.mxu0 0.0
  %200 = vmatpush1.msra.mxu0 0.0
  %201 = vmatprep.subr.mxu0 0.0
  %202 = vmatpush1.msra.mxu0 0.0
  %203 = vmatprep.subr.mxu0 0.0
  %204 = vmatpush1.msra.mxu0 0.0
  %205 = vmatprep.subr.mxu0 0.0
  %206 = vmatpush1.msra.mxu0 0.0
  %207 = vmatprep.subr.mxu0 0.0
  %208 = vmatpush1.msra.mxu0 0.0
  %209 = vmatprep.subr.mxu0 0.0
  %210 = vmatpush1.msra.mxu0 0.0
  %211 = vmatprep.subr.mxu0 0.0
  %212 = vmatpush1.msra.mxu0 0.0
  %213 = vmatprep.subr.mxu0 0.0
  %214 = vmatpush1.msra.mxu0 0.0
  %215 = vmatprep.subr.mxu0 0.0
  %216 = vmatpush1.msra.mxu0 0.0
  %217 = vmatprep.subr.mxu0 0.0
  %218 = vmatpush1.msra.mxu0 0.0
  %219 = vmatprep.subr.mxu0 0.0
  %220 = vmatpush1.msra.mxu0 0.0
  %221 = vmatprep.subr.mxu0 0.0
  %222 = vmatpush1.msra.mxu0 0.0
  %223 = vmatprep.subr.mxu0 0.0
  %224 = vmatpush1.msra.mxu0 0.0
  %225 = vmatprep.mubr.f32.mxu0 0.0
  %226 = vmatmul.mubr.f32.gmra.mrb[0].mxu0 %v62
  %v227 = vpop.f32.mrb[0].mxu0
  %v228 = vadd.f32 %v58, %v227
  %v229 = vpop.f32.mrb[0].mxu0
  %230 = vmatprep.mubr.f32.mxu0 0.0
  %231 = vmatmul.mubr.f32.gmra.mrb[0].mxu0 %v65
  %v232 = vpop.f32.mrb[0].mxu0
  %v233 = vadd.f32 %v58, %v232
  %v234 = vpop.f32.mrb[0].mxu0
  %235 = vmatprep.mubr.f32.mxu0 0.0
  %236 = vmatmul.mubr.f32.gmra.mrb[0].mxu0 %v68
  %v237 = vpop.f32.mrb[0].mxu0
  %v238 = vadd.f32 %v58, %v237
  %v239 = vpop.f32.mrb[0].mxu0
  %240 = vmatprep.mubr.f32.mxu0 0.0
  %241 = vmatmul.mubr.f32.gmra.mrb[0].mxu0 %v71
  %v242 = vpop.f32.mrb[0].mxu0
  %v243 = vadd.f32 %v58, %v242
  %v244 = vpop.f32.mrb[0].mxu0
  %245 = vmatprep.mubr.f32.mxu0 0.0
  %246 = vmatmul.mubr.f32.gmra.mrb[0].mxu0 %v74
  %v247 = vpop.f32.mrb[0].mxu0
  %v248 = vadd.f32 %v58, %v247
  %v249 = vpop.f32.mrb[0].mxu0
  %250 = vmatprep.mubr.f32.mxu0 0.0
  %251 = vmatmul.mubr.f32.gmra.mrb[0].mxu0 %v77
  %v252 = vpop.f32.mrb[0].mxu0
  %v253 = vadd.f32 %v58, %v252
  %v254 = vpop.f32.mrb[0].mxu0
  %255 = vmatprep.mubr.f32.mxu0 0.0
  %256 = vmatmul.mubr.f32.gmra.mrb[0].mxu0 %v80
  %v257 = vpop.f32.mrb[0].mxu0
  %v258 = vadd.f32 %v58, %v257
  %v259 = vpop.f32.mrb[0].mxu0
  %260 = vmatprep.mubr.f32.mxu0 0.0
  %261 = vmatmul.mubr.f32.gmra.mrb[0].mxu0 %v83
  %v262 = vpop.f32.mrb[0].mxu0
  %v263 = vadd.f32 %v58, %v262
  %v264 = vpop.f32.mrb[0].mxu0
  %265 = vmatprep.mubr.f32.mxu0 0.0
  %266 = vmatmul.mubr.f32.gmra.mrb[0].mxu0 %v86
  %v267 = vpop.f32.mrb[0].mxu0
  %v268 = vadd.f32 %v58, %v267
  %v269 = vpop.f32.mrb[0].mxu0
  %270 = vmatprep.mubr.f32.mxu0 0.0
  %271 = vmatmul.mubr.f32.gmra.mrb[0].mxu0 %v89
  %v272 = vpop.f32.mrb[0].mxu0
  %v273 = vadd.f32 %v58, %v272
  %v274 = vpop.f32.mrb[0].mxu0
  %275 = vmatprep.mubr.f32.mxu0 0.0
  %276 = vmatmul.mubr.f32.gmra.mrb[0].mxu0 %v92
  %v277 = vpop.f32.mrb[0].mxu0
  %v278 = vadd.f32 %v58, %v277
  %v279 = vpop.f32.mrb[0].mxu0
  %280 = vmatprep.mubr.f32.mxu0 0.0
  %281 = vmatmul.mubr.f32.gmra.mrb[0].mxu0 %v95
  %v282 = vpop.f32.mrb[0].mxu0
  %v283 = vadd.f32 %v58, %v282
  %v284 = vpop.f32.mrb[0].mxu0
  %285 = vmatprep.mubr.f32.mxu0 0.0
  %286 = vmatmul.mubr.f32.gmra.mrb[0].mxu0 %v98
  %v287 = vpop.f32.mrb[0].mxu0
  %v288 = vadd.f32 %v58, %v287
  %v289 = vpop.f32.mrb[0].mxu0
  %290 = vmatprep.mubr.f32.mxu0 0.0
  %291 = vmatmul.mubr.f32.gmra.mrb[0].mxu0 %v101
  %v292 = vpop.f32.mrb[0].mxu0
  %v293 = vadd.f32 %v58, %v292
  %v294 = vpop.f32.mrb[0].mxu0
  %295 = vmatprep.mubr.f32.mxu0 0.0
  %296 = vmatmul.mubr.f32.gmra.mrb[0].mxu0 %v104
  %v297 = vpop.f32.mrb[0].mxu0
  %v298 = vadd.f32 %v58, %v297
  %v299 = vpop.f32.mrb[0].mxu0
  %300 = vmatprep.mubr.f32.mxu0 0.0
  %301 = vmatmul.mubr.f32.gmra.mrb[0].mxu0 %v107
  %v302 = vpop.f32.mrb[0].mxu0
  %v303 = vadd.f32 %v58, %v302
  %v304 = vpop.f32.mrb[0].mxu0
  %305 = vmatprep.mubr.f32.mxu0 0.0
  %306 = vmatmul.mubr.f32.gmra.mrb[0].mxu0 %v110
  %v307 = vpop.f32.mrb[0].mxu0
  %v308 = vadd.f32 %v58, %v307
  %v309 = vpop.f32.mrb[0].mxu0
  %310 = vmatprep.mubr.f32.mxu0 0.0
  %311 = vmatmul.mubr.f32.gmra.mrb[0].mxu0 %v113
  %v312 = vpop.f32.mrb[0].mxu0
  %v313 = vadd.f32 %v58, %v312
  %v314 = vpop.f32.mrb[0].mxu0
  %315 = vmatprep.mubr.f32.mxu0 0.0
  %316 = vmatmul.mubr.f32.gmra.mrb[0].mxu0 %v116
  %v317 = vpop.f32.mrb[0].mxu0
  %v318 = vadd.f32 %v58, %v317
  %v319 = vpop.f32.mrb[0].mxu0
  %320 = vmatprep.mubr.f32.mxu0 0.0
  %321 = vmatmul.mubr.f32.gmra.mrb[0].mxu0 %v119
  %v322 = vpop.f32.mrb[0].mxu0
  %v323 = vadd.f32 %v58, %v322
  %v324 = vpop.f32.mrb[0].mxu0
  %325 = vmatprep.mubr.f32.mxu0 0.0
  %326 = vmatmul.mubr.f32.gmra.mrb[0].mxu0 %v122
  %v327 = vpop.f32.mrb[0].mxu0
  %v328 = vadd.f32 %v58, %v327
  %v329 = vpop.f32.mrb[0].mxu0
  %330 = vmatprep.mubr.f32.mxu0 0.0
  %331 = vmatmul.mubr.f32.gmra.mrb[0].mxu0 %v125
  %v332 = vpop.f32.mrb[0].mxu0
  %v333 = vadd.f32 %v58, %v332
  %v334 = vpop.f32.mrb[0].mxu0
  %335 = vmatprep.mubr.f32.mxu0 0.0
  %336 = vmatmul.mubr.f32.gmra.mrb[0].mxu0 %v128
  %v337 = vpop.f32.mrb[0].mxu0
  %v338 = vadd.f32 %v58, %v337
  %v339 = vpop.f32.mrb[0].mxu0
  %340 = vmatprep.mubr.f32.mxu0 0.0
  %341 = vmatmul.mubr.f32.gmra.mrb[0].mxu0 %v131
  %v342 = vpop.f32.mrb[0].mxu0
  %v343 = vadd.f32 %v58, %v342
  %v344 = vpop.f32.mrb[0].mxu0
  %345 = vmatprep.mubr.f32.mxu0 0.0
  %346 = vmatmul.mubr.f32.gmra.mrb[0].mxu0 %v134
  %v347 = vpop.f32.mrb[0].mxu0
  %v348 = vadd.f32 %v58, %v347
  %v349 = vpop.f32.mrb[0].mxu0
  %350 = vmatprep.mubr.f32.mxu0 0.0
  %351 = vmatmul.mubr.f32.gmra.mrb[0].mxu0 %v137
  %v352 = vpop.f32.mrb[0].mxu0
  %v353 = vadd.f32 %v58, %v352
  %v354 = vpop.f32.mrb[0].mxu0
  %355 = vmatprep.mubr.f32.mxu0 0.0
  %356 = vmatmul.mubr.f32.gmra.mrb[0].mxu0 %v140
  %v357 = vpop.f32.mrb[0].mxu0
  %v358 = vadd.f32 %v58, %v357
  %v359 = vpop.f32.mrb[0].mxu0
  %360 = vmatprep.mubr.f32.mxu0 0.0
  %361 = vmatmul.mubr.f32.gmra.mrb[0].mxu0 %v143
  %v362 = vpop.f32.mrb[0].mxu0
  %v363 = vadd.f32 %v58, %v362
  %v364 = vpop.f32.mrb[0].mxu0
  %365 = vmatprep.mubr.f32.mxu0 0.0
  %366 = vmatmul.mubr.f32.gmra.mrb[0].mxu0 %v146
  %v367 = vpop.f32.mrb[0].mxu0
  %v368 = vadd.f32 %v58, %v367
  %v369 = vpop.f32.mrb[0].mxu0
  %370 = vmatprep.mubr.f32.mxu0 0.0
  %371 = vmatmul.mubr.f32.gmra.mrb[0].mxu0 %v149
  %v372 = vpop.f32.mrb[0].mxu0
  %v373 = vadd.f32 %v58, %v372
  %v374 = vpop.f32.mrb[0].mxu0
  %375 = vmatprep.mubr.f32.mxu0 0.0
  %376 = vmatmul.mubr.f32.gmra.mrb[0].mxu0 %v152
  %v377 = vpop.f32.mrb[0].mxu0
  %v378 = vadd.f32 %v58, %v377
  %v379 = vpop.f32.mrb[0].mxu0
  %380 = vmatprep.mubr.f32.mxu0 0.0
  %381 = vmatmul.mubr.f32.gmra.mrb[0].mxu0 %v155
  %v382 = vpop.f32.mrb[0].mxu0
  %v383 = vadd.f32 %v58, %v382
  %v384 = vpop.f32.mrb[0].mxu0
  %385 = vdwg.mxu0
  %v386 = vmax.f32 %v228, 0.0
  %v387 = vmax.f32 %v233, 0.0
  %v388 = vmax.f32 %v238, 0.0
  %v389 = vmax.f32 %v243, 0.0
  %v390 = vmax.f32 %v248, 0.0
  %v391 = vmax.f32 %v253, 0.0
  %v392 = vmax.f32 %v258, 0.0
  %v393 = vmax.f32 %v263, 0.0
  %v394 = vmax.f32 %v268, 0.0
  %v395 = vmax.f32 %v273, 0.0
  %v396 = vmax.f32 %v278, 0.0
  %v397 = vmax.f32 %v283, 0.0
  %v398 = vmax.f32 %v288, 0.0
  %v399 = vmax.f32 %v293, 0.0
  %v400 = vmax.f32 %v298, 0.0
  %v401 = vmax.f32 %v303, 0.0
  %v402 = vmax.f32 %v308, 0.0
  %v403 = vmax.f32 %v313, 0.0
  %v404 = vmax.f32 %v318, 0.0
  %v405 = vmax.f32 %v323, 0.0
  %v406 = vmax.f32 %v328, 0.0
  %v407 = vmax.f32 %v333, 0.0
  %v408 = vmax.f32 %v338, 0.0
  %v409 = vmax.f32 %v343, 0.0
  %v410 = vmax.f32 %v348, 0.0
  %v411 = vmax.f32 %v353, 0.0
  %v412 = vmax.f32 %v358, 0.0
  %v413 = vmax.f32 %v363, 0.0
  %v414 = vmax.f32 %v368, 0.0
  %v415 = vmax.f32 %v373, 0.0
  %v416 = vmax.f32 %v378, 0.0
  %v417 = vmax.f32 %v383, 0.0
  %v418 = vld [vmem:[%s3] sm:$0xff]
  %v419 = vld [vmem:[%s3 + $0x8] sm:$0xff]
  %v420 = vld [vmem:[%s3 + $0x10] sm:$0xff]
  %v421 = vld [vmem:[%s3 + $0x18] sm:$0xff]
  %v422 = vld [vmem:[%s3 + $0x20] sm:$0xff]
  %v423 = vld [vmem:[%s3 + $0x28] sm:$0xff]
  %v424 = vld [vmem:[%s3 + $0x30] sm:$0xff]
  %v425 = vld [vmem:[%s3 + $0x38] sm:$0xff]
  %v426 = vld [vmem:[%s4] sm:$0x1]
  %v428 = vlaneseq
  %v429 = vshrl.u32 %v428, 7
  %v430 = vsub.s32 0, %v429
  %v431 = vrot.slane %v426, %v430
  %vm433 = vcmask 523264
  %v435 = vsel %vm433, %v386, 0
  %v438 = vsel %vm433, %v387, 0
  %v441 = vsel %vm433, %v388, 0
  %v444 = vsel %vm433, %v389, 0
  %v447 = vsel %vm433, %v390, 0
  %v450 = vsel %vm433, %v391, 0
  %v453 = vsel %vm433, %v392, 0
  %v456 = vsel %vm433, %v393, 0
  %v459 = vsel %vm433, %v394, 0
  %v462 = vsel %vm433, %v395, 0
  %v465 = vsel %vm433, %v396, 0
  %v468 = vsel %vm433, %v397, 0
  %v471 = vsel %vm433, %v398, 0
  %v474 = vsel %vm433, %v399, 0
  %v477 = vsel %vm433, %v400, 0
  %v480 = vsel %vm433, %v401, 0
  %v483 = vsel %vm433, %v402, 0
  %v486 = vsel %vm433, %v403, 0
  %v489 = vsel %vm433, %v404, 0
  %v492 = vsel %vm433, %v405, 0
  %v495 = vsel %vm433, %v406, 0
  %v498 = vsel %vm433, %v407, 0
  %v501 = vsel %vm433, %v408, 0
  %v504 = vsel %vm433, %v409, 0
  %v507 = vsel %vm433, %v410, 0
  %v510 = vsel %vm433, %v411, 0
  %v513 = vsel %vm433, %v412, 0
  %v516 = vsel %vm433, %v413, 0
  %v519 = vsel %vm433, %v414, 0
  %v522 = vsel %vm433, %v415, 0
  %v525 = vsel %vm433, %v416, 0
  %v528 = vsel %vm433, %v417, 0
  %530 = vmatprep.subr.mxu0 0.0
  %531 = vmatpush1.msra.mxu0 %v418
  %532 = vmatprep.subr.mxu0 0.0
  %533 = vmatpush1.msra.mxu0 %v419
  %534 = vmatprep.subr.mxu0 0.0
  %535 = vmatpush1.msra.mxu0 %v420
  %536 = vmatprep.subr.mxu0 0.0
  %537 = vmatpush1.msra.mxu0 %v421
  %538 = vmatprep.subr.mxu0 0.0
  %539 = vmatpush1.msra.mxu0 %v422
  %540 = vmatprep.subr.mxu0 0.0
  %541 = vmatpush1.msra.mxu0 %v423
  %542 = vmatprep.subr.mxu0 0.0
  %543 = vmatpush1.msra.mxu0 %v424
  %544 = vmatprep.subr.mxu0 0.0
  %545 = vmatpush1.msra.mxu0 %v425
  %546 = vmatprep.subr.mxu0 0.0
  %547 = vmatpush1.msra.mxu0 0.0
  %548 = vmatprep.subr.mxu0 0.0
  %549 = vmatpush1.msra.mxu0 0.0
  %550 = vmatprep.subr.mxu0 0.0
  %551 = vmatpush1.msra.mxu0 0.0
  %552 = vmatprep.subr.mxu0 0.0
  %553 = vmatpush1.msra.mxu0 0.0
  %554 = vmatprep.subr.mxu0 0.0
  %555 = vmatpush1.msra.mxu0 0.0
  %556 = vmatprep.subr.mxu0 0.0
  %557 = vmatpush1.msra.mxu0 0.0
  %558 = vmatprep.subr.mxu0 0.0
  %559 = vmatpush1.msra.mxu0 0.0
  %560 = vmatprep.subr.mxu0 0.0
  %561 = vmatpush1.msra.mxu0 0.0
  %562 = vmatprep.subr.mxu0 0.0
  %563 = vmatpush1.msra.mxu0 0.0
  %564 = vmatprep.subr.mxu0 0.0
  %565 = vmatpush1.msra.mxu0 0.0
  %566 = vmatprep.subr.mxu0 0.0
  %567 = vmatpush1.msra.mxu0 0.0
  %568 = vmatprep.subr.mxu0 0.0
  %569 = vmatpush1.msra.mxu0 0.0
  %570 = vmatprep.subr.mxu0 0.0
  %571 = vmatpush1.msra.mxu0 0.0
  %572 = vmatprep.subr.mxu0 0.0
  %573 = vmatpush1.msra.mxu0 0.0
  %574 = vmatprep.subr.mxu0 0.0
  %575 = vmatpush1.msra.mxu0 0.0
  %576 = vmatprep.subr.mxu0 0.0
  %577 = vmatpush1.msra.mxu0 0.0
  %578 = vmatprep.subr.mxu0 0.0
  %579 = vmatpush1.msra.mxu0 0.0
  %580 = vmatprep.subr.mxu0 0.0
  %581 = vmatpush1.msra.mxu0 0.0
  %582 = vmatprep.subr.mxu0 0.0
  %583 = vmatpush1.msra.mxu0 0.0
  %584 = vmatprep.subr.mxu0 0.0
  %585 = vmatpush1.msra.mxu0 0.0
  %586 = vmatprep.subr.mxu0 0.0
  %587 = vmatpush1.msra.mxu0 0.0
  %588 = vmatprep.subr.mxu0 0.0
  %589 = vmatpush1.msra.mxu0 0.0
  %590 = vmatprep.subr.mxu0 0.0
  %591 = vmatpush1.msra.mxu0 0.0
  %592 = vmatprep.subr.mxu0 0.0
  %593 = vmatpush1.msra.mxu0 0.0
  %594 = vmatprep.mubr.f32.mxu0 0.0
  %595 = vmatmul.mubr.f32.gmra.mrb[0].mxu0 %v435
  %v596 = vpop.f32.mrb[0].mxu0
  %v597 = vadd.f32 %v431, %v596
  %v598 = vpop.f32.mrb[0].mxu0
  %599 = vmatprep.mubr.f32.mxu0 0.0
  %600 = vmatmul.mubr.f32.gmra.mrb[0].mxu0 %v438
  %v601 = vpop.f32.mrb[0].mxu0
  %v602 = vadd.f32 %v431, %v601
  %v603 = vpop.f32.mrb[0].mxu0
  %604 = vmatprep.mubr.f32.mxu0 0.0
  %605 = vmatmul.mubr.f32.gmra.mrb[0].mxu0 %v441
  %v606 = vpop.f32.mrb[0].mxu0
  %v607 = vadd.f32 %v431, %v606
  %v608 = vpop.f32.mrb[0].mxu0
  %609 = vmatprep.mubr.f32.mxu0 0.0
  %610 = vmatmul.mubr.f32.gmra.mrb[0].mxu0 %v444
  %v611 = vpop.f32.mrb[0].mxu0
  %v612 = vadd.f32 %v431, %v611
  %v613 = vpop.f32.mrb[0].mxu0
  %614 = vmatprep.mubr.f32.mxu0 0.0
  %615 = vmatmul.mubr.f32.gmra.mrb[0].mxu0 %v447
  %v616 = vpop.f32.mrb[0].mxu0
  %v617 = vadd.f32 %v431, %v616
  %v618 = vpop.f32.mrb[0].mxu0
  %619 = vmatprep.mubr.f32.mxu0 0.0
  %620 = vmatmul.mubr.f32.gmra.mrb[0].mxu0 %v450
  %v621 = vpop.f32.mrb[0].mxu0
  %v622 = vadd.f32 %v431, %v621
  %v623 = vpop.f32.mrb[0].mxu0
  %624 = vmatprep.mubr.f32.mxu0 0.0
  %625 = vmatmul.mubr.f32.gmra.mrb[0].mxu0 %v453
  %v626 = vpop.f32.mrb[0].mxu0
  %v627 = vadd.f32 %v431, %v626
  %v628 = vpop.f32.mrb[0].mxu0
  %629 = vmatprep.mubr.f32.mxu0 0.0
  %630 = vmatmul.mubr.f32.gmra.mrb[0].mxu0 %v456
  %v631 = vpop.f32.mrb[0].mxu0
  %v632 = vadd.f32 %v431, %v631
  %v633 = vpop.f32.mrb[0].mxu0
  %634 = vmatprep.mubr.f32.mxu0 0.0
  %635 = vmatmul.mubr.f32.gmra.mrb[0].mxu0 %v459
  %v636 = vpop.f32.mrb[0].mxu0
  %v637 = vadd.f32 %v431, %v636
  %v638 = vpop.f32.mrb[0].mxu0
  %639 = vmatprep.mubr.f32.mxu0 0.0
  %640 = vmatmul.mubr.f32.gmra.mrb[0].mxu0 %v462
  %v641 = vpop.f32.mrb[0].mxu0
  %v642 = vadd.f32 %v431, %v641
  %v643 = vpop.f32.mrb[0].mxu0
  %644 = vmatprep.mubr.f32.mxu0 0.0
  %645 = vmatmul.mubr.f32.gmra.mrb[0].mxu0 %v465
  %v646 = vpop.f32.mrb[0].mxu0
  %v647 = vadd.f32 %v431, %v646
  %v648 = vpop.f32.mrb[0].mxu0
  %649 = vmatprep.mubr.f32.mxu0 0.0
  %650 = vmatmul.mubr.f32.gmra.mrb[0].mxu0 %v468
  %v651 = vpop.f32.mrb[0].mxu0
  %v652 = vadd.f32 %v431, %v651
  %v653 = vpop.f32.mrb[0].mxu0
  %654 = vmatprep.mubr.f32.mxu0 0.0
  %655 = vmatmul.mubr.f32.gmra.mrb[0].mxu0 %v471
  %v656 = vpop.f32.mrb[0].mxu0
  %v657 = vadd.f32 %v431, %v656
  %v658 = vpop.f32.mrb[0].mxu0
  %659 = vmatprep.mubr.f32.mxu0 0.0
  %660 = vmatmul.mubr.f32.gmra.mrb[0].mxu0 %v474
  %v661 = vpop.f32.mrb[0].mxu0
  %v662 = vadd.f32 %v431, %v661
  %v663 = vpop.f32.mrb[0].mxu0
  %664 = vmatprep.mubr.f32.mxu0 0.0
  %665 = vmatmul.mubr.f32.gmra.mrb[0].mxu0 %v477
  %v666 = vpop.f32.mrb[0].mxu0
  %v667 = vadd.f32 %v431, %v666
  %v668 = vpop.f32.mrb[0].mxu0
  %669 = vmatprep.mubr.f32.mxu0 0.0
  %670 = vmatmul.mubr.f32.gmra.mrb[0].mxu0 %v480
  %v671 = vpop.f32.mrb[0].mxu0
  %v672 = vadd.f32 %v431, %v671
  %v673 = vpop.f32.mrb[0].mxu0
  %674 = vmatprep.mubr.f32.mxu0 0.0
  %675 = vmatmul.mubr.f32.gmra.mrb[0].mxu0 %v483
  %v676 = vpop.f32.mrb[0].mxu0
  %v677 = vadd.f32 %v431, %v676
  %v678 = vpop.f32.mrb[0].mxu0
  %679 = vmatprep.mubr.f32.mxu0 0.0
  %680 = vmatmul.mubr.f32.gmra.mrb[0].mxu0 %v486
  %v681 = vpop.f32.mrb[0].mxu0
  %v682 = vadd.f32 %v431, %v681
  %v683 = vpop.f32.mrb[0].mxu0
  %684 = vmatprep.mubr.f32.mxu0 0.0
  %685 = vmatmul.mubr.f32.gmra.mrb[0].mxu0 %v489
  %v686 = vpop.f32.mrb[0].mxu0
  %v687 = vadd.f32 %v431, %v686
  %v688 = vpop.f32.mrb[0].mxu0
  %689 = vmatprep.mubr.f32.mxu0 0.0
  %690 = vmatmul.mubr.f32.gmra.mrb[0].mxu0 %v492
  %v691 = vpop.f32.mrb[0].mxu0
  %v692 = vadd.f32 %v431, %v691
  %v693 = vpop.f32.mrb[0].mxu0
  %694 = vmatprep.mubr.f32.mxu0 0.0
  %695 = vmatmul.mubr.f32.gmra.mrb[0].mxu0 %v495
  %v696 = vpop.f32.mrb[0].mxu0
  %v697 = vadd.f32 %v431, %v696
  %v698 = vpop.f32.mrb[0].mxu0
  %699 = vmatprep.mubr.f32.mxu0 0.0
  %700 = vmatmul.mubr.f32.gmra.mrb[0].mxu0 %v498
  %v701 = vpop.f32.mrb[0].mxu0
  %v702 = vadd.f32 %v431, %v701
  %v703 = vpop.f32.mrb[0].mxu0
  %704 = vmatprep.mubr.f32.mxu0 0.0
  %705 = vmatmul.mubr.f32.gmra.mrb[0].mxu0 %v501
  %v706 = vpop.f32.mrb[0].mxu0
  %v707 = vadd.f32 %v431, %v706
  %v708 = vpop.f32.mrb[0].mxu0
  %709 = vmatprep.mubr.f32.mxu0 0.0
  %710 = vmatmul.mubr.f32.gmra.mrb[0].mxu0 %v504
  %v711 = vpop.f32.mrb[0].mxu0
  %v712 = vadd.f32 %v431, %v711
  %v713 = vpop.f32.mrb[0].mxu0
  %714 = vmatprep.mubr.f32.mxu0 0.0
  %715 = vmatmul.mubr.f32.gmra.mrb[0].mxu0 %v507
  %v716 = vpop.f32.mrb[0].mxu0
  %v717 = vadd.f32 %v431, %v716
  %v718 = vpop.f32.mrb[0].mxu0
  %719 = vmatprep.mubr.f32.mxu0 0.0
  %720 = vmatmul.mubr.f32.gmra.mrb[0].mxu0 %v510
  %v721 = vpop.f32.mrb[0].mxu0
  %v722 = vadd.f32 %v431, %v721
  %v723 = vpop.f32.mrb[0].mxu0
  %724 = vmatprep.mubr.f32.mxu0 0.0
  %725 = vmatmul.mubr.f32.gmra.mrb[0].mxu0 %v513
  %v726 = vpop.f32.mrb[0].mxu0
  %v727 = vadd.f32 %v431, %v726
  %v728 = vpop.f32.mrb[0].mxu0
  %729 = vmatprep.mubr.f32.mxu0 0.0
  %730 = vmatmul.mubr.f32.gmra.mrb[0].mxu0 %v516
  %v731 = vpop.f32.mrb[0].mxu0
  %v732 = vadd.f32 %v431, %v731
  %v733 = vpop.f32.mrb[0].mxu0
  %734 = vmatprep.mubr.f32.mxu0 0.0
  %735 = vmatmul.mubr.f32.gmra.mrb[0].mxu0 %v519
  %v736 = vpop.f32.mrb[0].mxu0
  %v737 = vadd.f32 %v431, %v736
  %v738 = vpop.f32.mrb[0].mxu0
  %739 = vmatprep.mubr.f32.mxu0 0.0
  %740 = vmatmul.mubr.f32.gmra.mrb[0].mxu0 %v522
  %v741 = vpop.f32.mrb[0].mxu0
  %v742 = vadd.f32 %v431, %v741
  %v743 = vpop.f32.mrb[0].mxu0
  %744 = vmatprep.mubr.f32.mxu0 0.0
  %745 = vmatmul.mubr.f32.gmra.mrb[0].mxu0 %v525
  %v746 = vpop.f32.mrb[0].mxu0
  %v747 = vadd.f32 %v431, %v746
  %v748 = vpop.f32.mrb[0].mxu0
  %749 = vmatprep.mubr.f32.mxu0 0.0
  %750 = vmatmul.mubr.f32.gmra.mrb[0].mxu0 %v528
  %v751 = vpop.f32.mrb[0].mxu0
  %v752 = vadd.f32 %v431, %v751
  %v753 = vpop.f32.mrb[0].mxu0
  %754 = vdwg.mxu0
  %v755 = vmax.f32 %v597, 0.0
  %v756 = vmax.f32 %v602, 0.0
  %v757 = vmax.f32 %v607, 0.0
  %v758 = vmax.f32 %v612, 0.0
  %v759 = vmax.f32 %v617, 0.0
  %v760 = vmax.f32 %v622, 0.0
  %v761 = vmax.f32 %v627, 0.0
  %v762 = vmax.f32 %v632, 0.0
  %v763 = vmax.f32 %v637, 0.0
  %v764 = vmax.f32 %v642, 0.0
  %v765 = vmax.f32 %v647, 0.0
  %v766 = vmax.f32 %v652, 0.0
  %v767 = vmax.f32 %v657, 0.0
  %v768 = vmax.f32 %v662, 0.0
  %v769 = vmax.f32 %v667, 0.0
  %v770 = vmax.f32 %v672, 0.0
  %v771 = vmax.f32 %v677, 0.0
  %v772 = vmax.f32 %v682, 0.0
  %v773 = vmax.f32 %v687, 0.0
  %v774 = vmax.f32 %v692, 0.0
  %v775 = vmax.f32 %v697, 0.0
  %v776 = vmax.f32 %v702, 0.0
  %v777 = vmax.f32 %v707, 0.0
  %v778 = vmax.f32 %v712, 0.0
  %v779 = vmax.f32 %v717, 0.0
  %v780 = vmax.f32 %v722, 0.0
  %v781 = vmax.f32 %v727, 0.0
  %v782 = vmax.f32 %v732, 0.0
  %v783 = vmax.f32 %v737, 0.0
  %v784 = vmax.f32 %v742, 0.0
  %v785 = vmax.f32 %v747, 0.0
  %v786 = vmax.f32 %v752, 0.0
  %vm787 = vcmask 261120
  %788 = vst.msk [vmem:[%s5] sm:$0xff] %vm787, %v755
  %789 = vst.msk [vmem:[%s5 + $0x8] sm:$0xff] %vm787, %v756
  %790 = vst.msk [vmem:[%s5 + $0x10] sm:$0xff] %vm787, %v757
  %791 = vst.msk [vmem:[%s5 + $0x18] sm:$0xff] %vm787, %v758
  %792 = vst.msk [vmem:[%s5 + $0x20] sm:$0xff] %vm787, %v759
  %793 = vst.msk [vmem:[%s5 + $0x28] sm:$0xff] %vm787, %v760
  %794 = vst.msk [vmem:[%s5 + $0x30] sm:$0xff] %vm787, %v761
  %795 = vst.msk [vmem:[%s5 + $0x38] sm:$0xff] %vm787, %v762
  %796 = vst.msk [vmem:[%s5 + $0x40] sm:$0xff] %vm787, %v763
  %797 = vst.msk [vmem:[%s5 + $0x48] sm:$0xff] %vm787, %v764
  %798 = vst.msk [vmem:[%s5 + $0x50] sm:$0xff] %vm787, %v765
  %799 = vst.msk [vmem:[%s5 + $0x58] sm:$0xff] %vm787, %v766
  %800 = vst.msk [vmem:[%s5 + $0x60] sm:$0xff] %vm787, %v767
  %801 = vst.msk [vmem:[%s5 + $0x68] sm:$0xff] %vm787, %v768
  %802 = vst.msk [vmem:[%s5 + $0x70] sm:$0xff] %vm787, %v769
  %803 = vst.msk [vmem:[%s5 + $0x78] sm:$0xff] %vm787, %v770
  %804 = vst.msk [vmem:[%s5 + $0x80] sm:$0xff] %vm787, %v771
  %805 = vst.msk [vmem:[%s5 + $0x88] sm:$0xff] %vm787, %v772
  %806 = vst.msk [vmem:[%s5 + $0x90] sm:$0xff] %vm787, %v773
  %807 = vst.msk [vmem:[%s5 + $0x98] sm:$0xff] %vm787, %v774
  %808 = vst.msk [vmem:[%s5 + $0xa0] sm:$0xff] %vm787, %v775
  %809 = vst.msk [vmem:[%s5 + $0xa8] sm:$0xff] %vm787, %v776
  %810 = vst.msk [vmem:[%s5 + $0xb0] sm:$0xff] %vm787, %v777
  %811 = vst.msk [vmem:[%s5 + $0xb8] sm:$0xff] %vm787, %v778
  %812 = vst.msk [vmem:[%s5 + $0xc0] sm:$0xff] %vm787, %v779
  %813 = vst.msk [vmem:[%s5 + $0xc8] sm:$0xff] %vm787, %v780
  %814 = vst.msk [vmem:[%s5 + $0xd0] sm:$0xff] %vm787, %v781
  %815 = vst.msk [vmem:[%s5 + $0xd8] sm:$0xff] %vm787, %v782
  %816 = vst.msk [vmem:[%s5 + $0xe0] sm:$0xff] %vm787, %v783
  %817 = vst.msk [vmem:[%s5 + $0xe8] sm:$0xff] %vm787, %v784
  %818 = vst.msk [vmem:[%s5 + $0xf0] sm:$0xff] %vm787, %v785
  %819 = vst.msk [vmem:[%s5 + $0xf8] sm:$0xff] %vm787, %v786
  // Predicated region
  $region22: #{tpu_custom_call.1} parent=0 // pred_check
    _
  $region23: #{tpu_custom_call.1} parent=0 // pred_check_branch
    %821 = sbr.rel (0) target = $region25
  $region24: #{tpu_custom_call.1} parent=0 // pred_region
    _
  $region25: #{tpu_custom_call.1} parent=0 // pred_fallthru
    _
  // Predicated region
  $region26: #{tpu_custom_call.1} parent=0 // pred_check
    _
  $region27: #{tpu_custom_call.1} parent=0 // pred_check_branch
    %823 = sbr.rel (0) target = $region29
  $region28: #{tpu_custom_call.1} parent=0 // pred_region
    _
  $region29: #{tpu_custom_call.1} parent=0 // pred_fallthru
    _

</llo_original>
